<compile_context>
chip_gen: v6e
topology: v6e:2x2x1
jax: 0.10.0
libtpu: 0.0.40
codegen_flags: <defaults>
</compile_context>

<pallas_src>
import jax
import jax.numpy as jnp
from jax.experimental import pallas as pl
from jax.experimental.pallas import tpu as pltpu


def _unembed_kernel(x_ref, o_ref):
    # x_ref: (TL, C) tile for one batch element; o_ref: (C, TL).
    # Pure XLU transpose -- the XLU slot is otherwise idle, so on v5e/v6e this
    # rides for free underneath the HBM DMAs (kernel is memory-bound).
    o_ref[...] = jnp.swapaxes(x_ref[...], 0, 1)


def _round_up(v, m):
    return -(-v // m) * m


def _vmem_params():
    """Per-generation (tile-buffer budget, base vmem limit, physical capacity)."""
    try:
        cap = int(pltpu.get_tpu_info().vmem_capacity_bytes)
    except Exception:  # query unavailable -> assume the tighter (v7x-like) budget
        cap = 64 * 1024 * 1024
    if cap <= 64 * 1024 * 1024:
        # v7x-class: 64 MiB physical per TC, 32 MiB scoped default.
        return 10 * 1024 * 1024, 32 * 1024 * 1024, cap
    # v5e / v6e: 128 MiB physical -> spend more on tiles (bigger blocks are the
    # measured lever for mem-bound kernels: 128 -> 29% of roofline, 1024 -> 86%).
    return 20 * 1024 * 1024, 64 * 1024 * 1024, cap


def _block_bytes(tl, C, itemsize):
    """Physical VMEM bytes of one (TL, C) input block and one (C, TL) output
    block, including lane (128) / sublane (8) padding."""
    in_bytes = _round_up(tl, 8) * max(C, 128) * itemsize
    out_bytes = _round_up(C, 8) * max(tl, 128) * itemsize
    return in_bytes, out_bytes


def _pick_l_tile(L, C, itemsize, budget_bytes):
    """Largest lane-dense tile length along the token axis that fits the budget.

    Budget covers double-buffered input (TL, C) + output (C, TL) blocks with
    their real (lane/sublane padded) VMEM footprint.
    """
    per_token = 2 * (max(C, 128) + _round_up(C, 8)) * itemsize  # 2 = double buffer
    max_tl = budget_bytes // per_token
    if max_tl >= L:
        return L  # one full-L block per batch element (always a legal block shape)
    max_tl = max(128, (max_tl // 128) * 128)  # lane-dense: multiple of 128
    # Prefer a reasonably large divisor of L: no ragged trailing tile means every
    # output store is an unmasked full-width vst and every DMA is full-width.
    floor = max(512, max_tl // 2) if max_tl >= 512 else 128
    for k in range(max_tl // 128, 0, -1):
        tl = k * 128
        if tl < floor:
            break
        if L % tl == 0:
            return tl
    return max_tl  # ragged trailing tile; masked stores handled by the pipeline


def patch_unembed_3d(x, x_size, embed_dim):
    """x: (B, L, C) with L = D*H*W, C = embed_dim. Returns (B, C, D, H, W)."""
    D, H, W = x_size
    B, L, C = x.shape
    assert C == embed_dim and L == D * H * W
    itemsize = jnp.dtype(x.dtype).itemsize

    budget, base_limit, vmem_cap = _vmem_params()
    tl = _pick_l_tile(L, C, itemsize, budget)
    n_l = pl.cdiv(L, tl)

    in_bytes, out_bytes = _block_bytes(tl, C, itemsize)

    # Deepen the input pipeline when steps are short (small blocks, many steps):
    # there is essentially no VALU work to hide DMA turnaround behind, so a
    # third input buffer hides issue latency at step boundaries cheaply.
    in_buffers = 3 if (n_l >= 3 and in_bytes <= (1 << 20)) else 2

    # Resource-correctness: very large C can push even a TL=128 block set past
    # the per-generation default limit; raise it (bounded well below physical).
    required = in_buffers * in_bytes + 2 * out_bytes
    vmem_limit = max(base_limit, 2 * required)
    vmem_limit = min(vmem_limit, (vmem_cap * 3) // 4)
    vmem_limit = max(vmem_limit, required)

    in_index = lambda l, b: (b, l, 0)
    out_index = lambda l, b: (b, 0, l)
    if in_buffers == 3:
        in_spec = pl.BlockSpec((None, tl, C), in_index, pipeline_mode=pl.Buffered(3))
    else:
        in_spec = pl.BlockSpec((None, tl, C), in_index)

    out_bcl = pl.pallas_call(
        _unembed_kernel,
        out_shape=jax.ShapeDtypeStruct((B, C, L), x.dtype),
        grid_spec=pltpu.PrefetchScalarGridSpec(
            num_scalar_prefetch=0,
            # Long axis (token tiles) leads so it is what gets split across
            # v7x's two TensorCores; batch (often 1..4) is the inner axis.
            grid=(n_l, B),
            # Input block (TL, C): last dim equals full C (legal for any C),
            # TL is a multiple of 128 or equals L.  Output block (C, TL):
            # lane dim TL is a multiple of 128 (or == L) -> unmasked stores.
            in_specs=[in_spec],
            out_specs=pl.BlockSpec((None, C, tl), out_index),
        ),
        compiler_params=pltpu.CompilerParams(
            # Both axes are independent work -> shardable across v7x's 2 TCs.
            dimension_semantics=("parallel", "parallel"),
            vmem_limit_bytes=int(vmem_limit),
        ),
    )(x)

    # Metadata-only reshape to the PyTorch NCDHW output layout.
    return out_bcl.reshape(B, C, D, H, W)


if __name__ == "__main__":
    # Small shapes consistent with the module: B=2, embed_dim=32, (D,H,W)=(2,4,4).
    B = 2
    embed_dim = 32
    D, H, W = 2, 4, 4
    L = D * H * W

    key = jax.random.PRNGKey(0)
    x = jax.random.normal(key, (B, L, embed_dim), dtype=jnp.float32)

    out = patch_unembed_3d(x, (D, H, W), embed_dim)
    out = jax.block_until_ready(out)

    # Reference in plain JAX (mirrors torch transpose(1,2) + view).
    ref = jnp.transpose(x, (0, 2, 1)).reshape(B, embed_dim, D, H, W)

    assert out.shape == (B, embed_dim, D, H, W), out.shape
    assert out.dtype == x.dtype
    assert jnp.array_equal(out, ref), "mismatch vs reference"

    print("KERNEL_OK")
</pallas_src>

<mosaic_0001>
module attributes {stable_mosaic.version = 11 : i64} {
  func.func @_unembed_kernel(%arg0: i32, %arg1: i32, %arg2: memref<1x32x32xf32, #tpu.memory_space<vmem>>, %arg3: memref<1x32x32xf32, #tpu.memory_space<vmem>>) attributes {dimension_semantics = [#tpu.dimension_semantics<parallel>, #tpu.dimension_semantics<parallel>], iteration_bounds = array<i64: 1, 2>, scalar_prefetch = 0 : i64, scratch_operands = 0 : i64, tpu.core_type = #tpu.core_type<tc>, window_params = [{transform_indices = @transform_0, window_bounds = array<i64: 1, 32, 32>}, {transform_indices = @transform_1, window_bounds = array<i64: 1, 32, 32>}]} {
    %c0 = arith.constant 0 : index
    %c0_0 = arith.constant 0 : index
    %c0_1 = arith.constant 0 : index
    %0 = vector.load %arg2[%c0, %c0_0, %c0_1] : memref<1x32x32xf32, #tpu.memory_space<vmem>>, vector<1x32x32xf32>
    %1 = vector.shape_cast %0 : vector<1x32x32xf32> to vector<32x32xf32>
    %2 = tpu.transpose %1, [1, 0] : vector<32x32xf32> -> vector<32x32xf32>
    %c0_2 = arith.constant 0 : index
    %c0_3 = arith.constant 0 : index
    %c0_4 = arith.constant 0 : index
    %3 = vector.load %arg3[%c0_2, %c0_3, %c0_4] : memref<1x32x32xf32, #tpu.memory_space<vmem>>, vector<1x32x32xf32>
    %4 = vector.shape_cast %3 : vector<1x32x32xf32> to vector<32x32xf32>
    %5 = vector.shape_cast %2 : vector<32x32xf32> to vector<1x32x32xf32>
    tpu.vector_store %arg3[%c0_2, %c0_3, %c0_4], %5 {strides = array<i32>} : memref<1x32x32xf32, #tpu.memory_space<vmem>>, vector<1x32x32xf32>,
    return
  }
  func.func @transform_0(%arg0: i32, %arg1: i32) -> (i32, i32, i32) {
    %c0_i32 = arith.constant 0 : i32
    %c0_i32_0 = arith.constant 0 : i32
    return %arg1, %arg0, %c0_i32 : i32, i32, i32
  }
  func.func @transform_1(%arg0: i32, %arg1: i32) -> (i32, i32, i32) {
    %c0_i32 = arith.constant 0 : i32
    %c0_i32_0 = arith.constant 0 : i32
    return %arg1, %c0_i32, %arg0 : i32, i32, i32
  }
}

</mosaic_0001>

<llo_original>
// kernel: tpu_custom_call.1
$region0: #{tpu_custom_call.1}
  #allocation0 [shape = 'u32[]', space=smem, size = 0x4, offset = 0x4, fixed_abs, tag = 'smem constant byte address 0x4 - core index']
  #allocation1 [shape = 'u32[144,128]{1,0:T(1,128)}', space=vmem, size = 0x12000, scoped, tag = 'internal scratch']
  %s0 = inlined_call_operand.hbm [shape: f32[2,32,32], index: 0, kind: input, shape index: {}]
  %s1 = inlined_call_operand.hbm [shape: f32[2,32,32], index: 1, kind: output, shape index: {}]
  %s2 = sld [smem:[#allocation0]]
  $region41: #{tpu_custom_call.1} parent=0
    _
  %s4 = ssub.s32 1, %s2
  %s5 = scalar_select 0, %s4, %s2
  $region1: #{tpu_custom_call.1} parent=0
    #allocation2 [shape = 'u8[32768]{0}', space=vmem, size = 0x8000, scoped, tag = 'input window, operand 0']
    #allocation3 [shape = 's32[2]{0}', space=sflag, size = 0x8, scoped, tag = 'scoped memory for tpu_custom_call.1']
    #allocation4 [shape = 's32[2]{0}', space=sflag, size = 0x8, scoped, tag = 'scoped memory for tpu_custom_call.1']
    #allocation5 [shape = 'u8[32768]{0}', space=vmem, size = 0x8000, scoped, tag = 'output window, operand 0']
    %6 = vsyncpa [#allocation3], 0
    %s7 = scalar_lea.sflag [#allocation3], 1
    %8 = vsyncpa %s7, 0
    %9 = vsyncpa [#allocation4], 0
    %s10 = scalar_lea.sflag [#allocation4], 1
    %11 = vsyncpa %s10, 0
    loop: start=0, step=1, limit=4
    $region2: #{tpu_custom_call.1} parent=1 // loop_pre_header
      _
    $region3: #{tpu_custom_call.1} parent=1 // loop_header
      %s13 = sphi 0, %s17
      %p14 = scmp.ge.s32.totalorder %s13, 4
      %s20 = sphi 0, %s32
      %s21 = sphi 0, %s28
      %s22 = sphi 0, %s20
      %s23 = sphi 0, %s21
      %s24 = sphi 0, %s22
      %s25 = sphi 0, %s23
      %s37 = sphi 0, %s39
      %s40 = sphi 0, %s37
      %s41 = sphi 0, %s40
      %s57 = sphi 0, %s41
      %s65 = sphi 0, %s67
      %s68 = sphi 0, %s65
      %s69 = sphi 0, %s68
      %s85 = sphi 0, %s69
    $region4: #{tpu_custom_call.1} parent=1 // loop_header_branch
      %16 = sbr.rel (%p14) target = $region8
    $region5: #{tpu_custom_call.1} parent=1 // loop_body
      %s18 = ssub.s32 %s13, 1
      %s19 = ssub.s32 %s13, 2
      %s26 = sadd.s32 1, %s21
      %p27 = scmp.ge.s32.totalorder %s26, 2
      %s28 = scalar_select %p27, 0, %s26
      %s29 = sadd.s32 1, %s20
      %s30 = scalar_select %p27, %s29, %s20
      %p31 = scmp.ge.s32.totalorder %s30, 1
      %s32 = scalar_select %p31, 0, %s30
      %s33 = ssub.s32 %s21, %s28
      %s34 = ssub.s32 %s20, %s32
      %s35 = sor.u32 %s33, %s34
      %p36 = scmp.eq.s32.totalorder %s35, 0
      %s38 = sadd.s32 %s37, 1
      %s39 = scalar_select %p36, %s37, %s38
      %p42 = pneg %p36
      %p43 = scmp.eq.s32.totalorder %s13, 1
      %p44 = por %p42, %p43
      %p45 = scmp.ne.s32.totalorder %s37, %s40
      %p46 = scmp.eq.s32.totalorder %s13, 0
      %p47 = por %p45, %p46
      %p48 = scmp.ne.s32.totalorder %s37, %s40
      %p49 = scmp.eq.s32.totalorder %s18, 1
      %p50 = por %p48, %p49
      %p51 = scmp.ne.s32.totalorder %s40, %s41
      %p52 = scmp.eq.s32.totalorder %s18, 0
      %p53 = por %p51, %p52
      %p54 = scmp.ne.s32.totalorder %s40, %s41
      %p55 = scmp.eq.s32.totalorder %s19, 1
      %p56 = por %p54, %p55
      %p58 = scmp.ne.s32.totalorder %s41, %s57
      %p59 = scmp.eq.s32.totalorder %s19, 0
      %p60 = por %p58, %p59
      %s61 = ssub.s32 %s21, %s28
      %s62 = ssub.s32 %s20, %s32
      %s63 = sor.u32 %s61, %s62
      %p64 = scmp.eq.s32.totalorder %s63, 0
      %s66 = sadd.s32 %s65, 1
      %s67 = scalar_select %p64, %s65, %s66
      %p70 = pneg %p64
      %p71 = scmp.eq.s32.totalorder %s13, 1
      %p72 = por %p70, %p71
      %p73 = scmp.ne.s32.totalorder %s65, %s68
      %p74 = scmp.eq.s32.totalorder %s13, 0
      %p75 = por %p73, %p74
      %p76 = scmp.ne.s32.totalorder %s65, %s68
      %p77 = scmp.eq.s32.totalorder %s18, 1
      %p78 = por %p76, %p77
      %p79 = scmp.ne.s32.totalorder %s68, %s69
      %p80 = scmp.eq.s32.totalorder %s18, 0
      %p81 = por %p79, %p80
      %p82 = scmp.ne.s32.totalorder %s68, %s69
      %p83 = scmp.eq.s32.totalorder %s19, 1
      %p84 = por %p82, %p83
      %p86 = scmp.ne.s32.totalorder %s69, %s85
      %p87 = scmp.eq.s32.totalorder %s19, 0
      %p88 = por %p86, %p87
      %p89 = scmp.le.s32.totalorder 1, %s13
      %p90 = scmp.lt.s32.totalorder %s13, 3
      %p91 = pnand %p89, %p90
      %p92 = pneg %p91
      // Predicated region
      $region9: #{tpu_custom_call.1} parent=5 // pred_check
        _
      $region10: #{tpu_custom_call.1} parent=5 // pred_check_branch
        %94 = sbr.rel (%p91) target = $region12
      $region11: #{tpu_custom_call.1} parent=5 // pred_region
        %s95 = ssub.s32 %s13, 1
      $region12: #{tpu_custom_call.1} parent=5 // pred_fallthru
        _
      %p96 = scmp.lt.s32.totalorder %s13, 2
      // Predicated region
      $region13: #{tpu_custom_call.1} parent=5 // pred_check
        %p97 = pneg %p96
      $region14: #{tpu_custom_call.1} parent=5 // pred_check_branch
        %99 = sbr.rel (%p97) target = $region16
      $region15: #{tpu_custom_call.1} parent=5 // pred_region
        // Predicated region
        $region17: #{tpu_custom_call.1} parent=15 // pred_check
          %p100 = pneg %p47
        $region18: #{tpu_custom_call.1} parent=15 // pred_check_branch
          %102 = sbr.rel (%p100) target = $region20
        $region19: #{tpu_custom_call.1} parent=15 // pred_region
          %s103 = sand.u32 %s37, 1
          %s104 = scalar_lea.sflag [#allocation3], %s103
          %s105 = sand.u32 %s37, 1
          %s106 = smul.addr %s105, 32
          %s107 = scalar_lea.vmem [#allocation2], %s106
          %s108 = smul.u32 4, %s20
          %s110 = ssub.s32 512, 512
          %111 = vsyncadd %s104, %s110
          %s112 = smul.addr %s21, 4
          %s113 = sadd.s32 %s108, %s112
          %s114 = smul.addr %s113, 128
          %s115 = scalar_lea.hbm %s0, %s114
          %s116 = sshll.u32 %s107, 4
          %s117 = int_to_ptr.vmem [resolvable:$true] %s116
          %122 = dma.hbm_to_vmem [thread:$0]  %s115, 512, %s117, %s104, 128, 128, 8
        $region20: #{tpu_custom_call.1} parent=15 // pred_fallthru
          _
      $region16: #{tpu_custom_call.1} parent=5 // pred_fallthru
        _
      %p123 = scmp.le.s32.totalorder 1, %s13
      %p124 = scmp.lt.s32.totalorder %s13, 3
      %p125 = pnand %p123, %p124
      %p126 = pneg %p125
      // Predicated region
      $region21: #{tpu_custom_call.1} parent=5 // pred_check
        _
      $region22: #{tpu_custom_call.1} parent=5 // pred_check_branch
        %128 = sbr.rel (%p125) target = $region24
      $region23: #{tpu_custom_call.1} parent=5 // pred_region
        %s129 = ssub.s32 %s13, 1
        %s130 = sand.u32 %s40, 1
        %s131 = scalar_lea.sflag [#allocation3], %s130
        %s132 = sand.u32 %s40, 1
        %s133 = smul.addr %s132, 32
        %s134 = scalar_lea.vmem [#allocation2], %s133
        // Predicated region
        $region25: #{tpu_custom_call.1} parent=23 // pred_check
          %p135 = pneg %p53
        $region26: #{tpu_custom_call.1} parent=23 // pred_check_branch
          %137 = sbr.rel (%p135) target = $region28
        $region27: #{tpu_custom_call.1} parent=23 // pred_region
          %138 = dma.done %s131, 512
        $region28: #{tpu_custom_call.1} parent=23 // pred_fallthru
          _
        %s139 = sand.u32 %s40, 1
        %s140 = scalar_lea.sflag [#allocation3], %s139
        %s141 = sand.u32 %s40, 1
        %s142 = smul.addr %s141, 32
        %s143 = scalar_lea.vmem [#allocation2], %s142
        %p144 = pneg %p53
        %p145 = pneg %p50
        %p146 = pneg %p81
        %p147 = pneg %p78
        %s148 = sand.u32 %s68, 1
        %s149 = scalar_lea.sflag [#allocation4], %s148
        %s150 = sand.u32 %s68, 1
        %s151 = smul.addr %s150, 32
        %s152 = scalar_lea.vmem [#allocation5], %s151
        %s153 = smul.u32 4, %s22
        %v154 = vld [vmem:[%s134] sm:$0xff]
        %v155 = vld [vmem:[%s134 + $0x8] sm:$0xff]
        %v156 = vld [vmem:[%s134 + $0x10] sm:$0xff]
        %v157 = vld [vmem:[%s134 + $0x18] sm:$0xff]
        %158 = vxpose.xlu0.b32.start [1/16] %v154, 128
        %159 = vxpose.xlu0.b32.cont [2/16] %v155, 128
        %160 = vxpose.xlu0.b32.cont [3/16] %v156, 128
        %161 = vxpose.xlu0.b32.cont [4/16] %v157, 128
        %162 = vxpose.xlu0.b32.cont [5/16] 0.0, 128
        %163 = vxpose.xlu0.b32.cont [6/16] 0.0, 128
        %164 = vxpose.xlu0.b32.cont [7/16] 0.0, 128
        %165 = vxpose.xlu0.b32.cont [8/16] 0.0, 128
        %166 = vxpose.xlu0.b32.cont [9/16] 0.0, 128
        %167 = vxpose.xlu0.b32.cont [10/16] 0.0, 128
        %168 = vxpose.xlu0.b32.cont [11/16] 0.0, 128
        %169 = vxpose.xlu0.b32.cont [12/16] 0.0, 128
        %170 = vxpose.xlu0.b32.cont [13/16] 0.0, 128
        %171 = vxpose.xlu0.b32.cont [14/16] 0.0, 128
        %172 = vxpose.xlu0.b32.cont [15/16] 0.0, 128
        %173 = vxpose.xlu0.b32.end [16/16] 0.0, 128
        %v174 = vpop.trf.xlu0
        %v175 = vpop.trf.xlu0
        %v176 = vpop.trf.xlu0
        %v177 = vpop.trf.xlu0
        %v178 = vpop.trf.xlu0
        %v179 = vpop.trf.xlu0
        %v180 = vpop.trf.xlu0
        %v181 = vpop.trf.xlu0
        %v182 = vpop.trf.xlu0
        %v183 = vpop.trf.xlu0
        %v184 = vpop.trf.xlu0
        %v185 = vpop.trf.xlu0
        %v186 = vpop.trf.xlu0
        %v187 = vpop.trf.xlu0
        %v188 = vpop.trf.xlu0
        %v189 = vpop.trf.xlu0
        %vm190 = vcmask 261120
        %191 = vst.msk [vmem:[%s152] sm:$0xff] %vm190, %v174
        %192 = vst.msk [vmem:[%s152 + $0x8] sm:$0xff] %vm190, %v175
        %193 = vst.msk [vmem:[%s152 + $0x10] sm:$0xff] %vm190, %v176
        %194 = vst.msk [vmem:[%s152 + $0x18] sm:$0xff] %vm190, %v177
        %s195 = sand.u32 %s68, 1
        %s196 = scalar_lea.sflag [#allocation4], %s195
        %s197 = sand.u32 %s68, 1
        %s198 = smul.addr %s197, 32
        %s199 = scalar_lea.vmem [#allocation5], %s198
        // Predicated region
        $region29: #{tpu_custom_call.1} parent=23 // pred_check
          %p200 = pneg %p78
        $region30: #{tpu_custom_call.1} parent=23 // pred_check_branch
          %202 = sbr.rel (%p200) target = $region32
        $region31: #{tpu_custom_call.1} parent=23 // pred_region
          %s204 = ssub.s32 512, 512
          %205 = vsyncadd %s196, %s204
          %s206 = smul.addr %s23, 4
          %s207 = sadd.s32 %s22, %s206
          %s208 = smul.addr %s207, 128
          %s209 = scalar_lea.hbm %s1, %s208
          %s210 = sshll.u32 %s199, 4
          %s211 = int_to_ptr.vmem [resolvable:$true] %s210
          %216 = dma.vmem_to_hbm [thread:$0]  %s211, 512, %s209, %s196, 128, 128, 8
        $region32: #{tpu_custom_call.1} parent=23 // pred_fallthru
          _
      $region24: #{tpu_custom_call.1} parent=5 // pred_fallthru
        _
      %p217 = scmp.le.s32.totalorder 2, %s13
      // Predicated region
      $region33: #{tpu_custom_call.1} parent=5 // pred_check
        %p218 = pneg %p217
      $region34: #{tpu_custom_call.1} parent=5 // pred_check_branch
        %220 = sbr.rel (%p218) target = $region36
      $region35: #{tpu_custom_call.1} parent=5 // pred_region
        %s221 = ssub.s32 %s13, 2
        // Predicated region
        $region37: #{tpu_custom_call.1} parent=35 // pred_check
          %p222 = pneg %p84
        $region38: #{tpu_custom_call.1} parent=35 // pred_check_branch
          %224 = sbr.rel (%p222) target = $region40
        $region39: #{tpu_custom_call.1} parent=35 // pred_region
          %s225 = sand.u32 %s69, 1
          %s226 = scalar_lea.sflag [#allocation4], %s225
          %s227 = sand.u32 %s69, 1
          %s228 = smul.addr %s227, 32
          %s229 = scalar_lea.vmem [#allocation5], %s228
          %230 = dma.done %s226, 512
        $region40: #{tpu_custom_call.1} parent=35 // pred_fallthru
          _
      $region36: #{tpu_custom_call.1} parent=5 // pred_fallthru
        _
    $region6: #{tpu_custom_call.1} parent=1 // loop_footer
      %s17 = sadd.s32 1, %s13
    $region7: #{tpu_custom_call.1} parent=1 // loop_footer_branch
      %12 = sbr.rel target = $region3
    $region8: #{tpu_custom_call.1} parent=1 // loop_exit
      _
    %231 = vsyncpa [#allocation3], 1
    %s232 = scalar_lea.sflag [#allocation3], 1
    %233 = vsyncpa %s232, 1
    %234 = vsyncpa [#allocation4], 1
    %s235 = scalar_lea.sflag [#allocation4], 1
    %236 = vsyncpa %s235, 1

</llo_original>
